<compile_context>
chip_gen: v5e
topology: v5e:2x2
jax: 0.10.0
libtpu: 0.0.40
codegen_flags: <defaults>
</compile_context>

<pallas_src>
import jax
import jax.numpy as jnp
import numpy as np
from jax.experimental import pallas as pl
from jax.experimental.pallas import tpu as pltpu


def _round_up(n, m):
    return ((n + m - 1) // m) * m


def _mix_sum_kernel(xt_ref, cs_ref, ot_ref):
    """ot[c, :] = sum_k cs[k, c] * xt[k, :]  (full-width VPU muls + XLU sublane reduces)."""
    xt = xt_ref[...]                         # (K, tile) f32, N on the 128-lane axis
    cs = cs_ref[...]                         # (K, C)    f32, already carries 1/K for 'mean'
    for c in range(cs.shape[1]):             # C == 3: fully unrolled
        prod = xt * cs[:, c:c + 1]           # (K,1) lane-broadcast; full-width multiply
        ot_ref[c:c + 1, :] = jnp.sum(prod, axis=0, keepdims=True)  # direct row store


def _mix_max_kernel(xt_ref, cs_ref, ot_ref):
    """ot[:, n] = color[argmax_k xt[k, n]] via a full-width one-hot (no per-row chain)."""
    xt = xt_ref[...]                         # (K, tile)
    cs = cs_ref[...]                         # (K, C)
    K = xt.shape[0]
    m = jnp.max(xt, axis=0, keepdims=True)                        # (1, tile) sublane max
    row = jax.lax.broadcasted_iota(jnp.float32, xt.shape, 0)      # (K, tile), exact small ints
    # NaN columns: m is NaN and (xt == m) is all-False; jnp.argmax returns the first NaN
    # index, so NaN rows also count as hits.  All-(-inf) columns tie -> index 0 (argmax).
    hit = (xt == m) | jnp.isnan(xt)
    first = jnp.min(jnp.where(hit, row, jnp.float32(K)), axis=0, keepdims=True)
    w = (row == first).astype(xt.dtype)                           # one-hot (K, tile)
    for c in range(cs.shape[1]):
        ot_ref[c:c + 1, :] = jnp.sum(w * cs[:, c:c + 1], axis=0, keepdims=True)


def color_mixer_cn(xt, color, mix="mean", *, tile_n=65536, vmem_limit_bytes=None):
    """Channels-first fast path: xt (ncenter, N) -> (C, N).  No layout plumbing.

    tile_n guidance (lanes per grid step; double-buffered block bytes ~= 64 * tile_n):
      v5e <= 65536 (16 MiB scoped-VMEM default); v6e ~131072; v7x ~131072, or ~262144 with
      vmem_limit_bytes ~= 44<<20 (64 MiB physical VMEM, 2 TensorCores).
    """
    xt = jnp.asarray(xt, jnp.float32)
    color = jnp.asarray(color, jnp.float32)
    K, N = xt.shape
    Kc, C = color.shape
    assert Kc == K

    if mix == "mean":
        cs = color * (1.0 / K)               # fold the mean scale into the tiny constant table
        kernel = _mix_sum_kernel
    elif mix == "sum":
        cs = color
        kernel = _mix_sum_kernel
    elif mix == "max":
        cs = color
        kernel = _mix_max_kernel
    else:
        raise ValueError(f"unknown mix: {mix}")

    # Lane tile: multiple of 128.  No padding of xt: grid = cdiv(N_pad128, tile) and Pallas
    # masks the partial last block.  Keep >= 2 grid steps when N allows so both v7x
    # TensorCores get work.
    n128 = _round_up(N, 128)
    tile = min(_round_up(max(int(tile_n), 128), 128), n128)
    if tile >= n128 and n128 >= 256:
        tile = _round_up((n128 + 1) // 2, 128)
    grid = pl.cdiv(n128, tile)

    cparams = dict(dimension_semantics=("parallel",))
    if vmem_limit_bytes is not None:
        cparams["vmem_limit_bytes"] = int(vmem_limit_bytes)

    return pl.pallas_call(
        kernel,
        out_shape=jax.ShapeDtypeStruct((C, N), jnp.float32),
        grid_spec=pl.GridSpec(
            grid=(grid,),
            in_specs=[
                pl.BlockSpec((K, tile), lambda i: (0, i)),   # lane-dense x strip
                pl.BlockSpec((K, C), lambda i: (0, 0)),      # tiny constant color table
            ],
            out_specs=pl.BlockSpec((C, tile), lambda i: (0, i)),  # lane-dense row stores
        ),
        compiler_params=pltpu.CompilerParams(**cparams),
    )(xt, cs)


def color_mixer(x, color, mix="mean", *, tile_n=65536, vmem_limit_bytes=None):
    """Module contract: x (N, ncenter) -> (N, C)."""
    # TODO(synk): x.T / out.T below are materialized HBM passes (XLA will not fuse a
    # transpose into a pallas_call operand); producers/consumers that can work
    # channels-first should call color_mixer_cn directly and skip both.
    x = jnp.asarray(x, jnp.float32)
    out_t = color_mixer_cn(x.T, color, mix, tile_n=tile_n,
                           vmem_limit_bytes=vmem_limit_bytes)
    return out_t.T


def color_mixer_ref(x, color, mix="mean"):
    # Pure-JAX reference mirroring the PyTorch forward exactly.
    if mix == "mean":
        return (x[..., None] * color[None, ...]).mean(1)
    elif mix == "sum":
        return (x[..., None] * color[None, ...]).sum(1)
    elif mix == "max":
        return color[jnp.argmax(x, axis=1)]


if __name__ == "__main__":
    key = jax.random.PRNGKey(0)
    k_color, k_x1, k_x2 = jax.random.split(key, 3)

    ncenter = 8
    # nn.Module default init is ones(ncenter, 3) * 255; a random table is used here so the
    # 'max' gather path is actually exercised (all-equal colors would hide index bugs).
    color = jax.random.uniform(k_color, (ncenter, 3), dtype=jnp.float32) * 255.0

    cases = {
        "N=512": jax.random.uniform(k_x1, (512, ncenter), dtype=jnp.float32),
        "N=300": jax.random.uniform(k_x2, (300, ncenter), dtype=jnp.float32),  # non-128-multiple N
    }

    ok = True
    for name, x in cases.items():
        for mix in ("mean", "sum", "max"):
            out = jax.block_until_ready(color_mixer(x, color, mix=mix))
            ref = np.asarray(color_mixer_ref(x, color, mix=mix))
            if not np.allclose(np.asarray(out), ref, rtol=1e-5, atol=1e-4):
                ok = False
                print(f"MISMATCH for {name}, mix={mix}")

    if ok:
        print("KERNEL_OK")
</pallas_src>

<mosaic_0001>
module attributes {stable_mosaic.version = 11 : i64} {
  func.func @_mix_sum_kernel(%arg0: i32, %arg1: memref<8x256xf32, #tpu.memory_space<vmem>>, %arg2: memref<8x3xf32, #tpu.memory_space<vmem>>, %arg3: memref<3x256xf32, #tpu.memory_space<vmem>>) attributes {dimension_semantics = [#tpu.dimension_semantics<parallel>], iteration_bounds = array<i64: 2>, scalar_prefetch = 0 : i64, scratch_operands = 0 : i64, tpu.core_type = #tpu.core_type<tc>, window_params = [{transform_indices = @transform_0, window_bounds = array<i64: 8, 256>}, {pipeline_mode = #tpu.pipeline_mode<synchronous>, transform_indices = @transform_1, window_bounds = array<i64: 8, 3>}, {transform_indices = @transform_2, window_bounds = array<i64: 3, 256>}]} {
    %c0 = arith.constant 0 : index
    %c0_0 = arith.constant 0 : index
    %0 = vector.load %arg1[%c0, %c0_0] : memref<8x256xf32, #tpu.memory_space<vmem>>, vector<8x256xf32>
    %c0_1 = arith.constant 0 : index
    %c0_2 = arith.constant 0 : index
    %1 = vector.load %arg2[%c0_1, %c0_2] : memref<8x3xf32, #tpu.memory_space<vmem>>, vector<8x3xf32>
    %2 = vector.extract_strided_slice %1 {offsets = [0, 0], sizes = [8, 1], strides = [1, 1]} : vector<8x3xf32> to vector<8x1xf32>
    %3 = vector.broadcast %2 : vector<8x1xf32> to vector<8x256xf32>
    %4 = arith.mulf %0, %3 : vector<8x256xf32>
    %cst = arith.constant dense<0.000000e+00> : vector<256xf32>
    %5 = vector.multi_reduction <add>, %4, %cst [0] : vector<8x256xf32> to vector<256xf32>
    %6 = vector.shape_cast %5 : vector<256xf32> to vector<1x256xf32>
    %c0_3 = arith.constant 0 : index
    %c0_4 = arith.constant 0 : index
    %7 = vector.load %arg3[%c0_3, %c0_4] : memref<3x256xf32, #tpu.memory_space<vmem>>, vector<1x256xf32>
    tpu.vector_store %arg3[%c0_3, %c0_4], %6 {strides = array<i32>} : memref<3x256xf32, #tpu.memory_space<vmem>>, vector<1x256xf32>,
    %8 = vector.extract_strided_slice %1 {offsets = [0, 1], sizes = [8, 1], strides = [1, 1]} : vector<8x3xf32> to vector<8x1xf32>
    %9 = vector.broadcast %8 : vector<8x1xf32> to vector<8x256xf32>
    %10 = arith.mulf %0, %9 : vector<8x256xf32>
    %cst_5 = arith.constant dense<0.000000e+00> : vector<256xf32>
    %11 = vector.multi_reduction <add>, %10, %cst_5 [0] : vector<8x256xf32> to vector<256xf32>
    %12 = vector.shape_cast %11 : vector<256xf32> to vector<1x256xf32>
    %c1 = arith.constant 1 : index
    %c0_6 = arith.constant 0 : index
    %13 = vector.load %arg3[%c1, %c0_6] : memref<3x256xf32, #tpu.memory_space<vmem>>, vector<1x256xf32>
    tpu.vector_store %arg3[%c1, %c0_6], %12 {strides = array<i32>} : memref<3x256xf32, #tpu.memory_space<vmem>>, vector<1x256xf32>,
    %14 = vector.extract_strided_slice %1 {offsets = [0, 2], sizes = [8, 1], strides = [1, 1]} : vector<8x3xf32> to vector<8x1xf32>
    %15 = vector.broadcast %14 : vector<8x1xf32> to vector<8x256xf32>
    %16 = arith.mulf %0, %15 : vector<8x256xf32>
    %cst_7 = arith.constant dense<0.000000e+00> : vector<256xf32>
    %17 = vector.multi_reduction <add>, %16, %cst_7 [0] : vector<8x256xf32> to vector<256xf32>
    %18 = vector.shape_cast %17 : vector<256xf32> to vector<1x256xf32>
    %c2 = arith.constant 2 : index
    %c0_8 = arith.constant 0 : index
    %19 = vector.load %arg3[%c2, %c0_8] : memref<3x256xf32, #tpu.memory_space<vmem>>, vector<1x256xf32>
    tpu.vector_store %arg3[%c2, %c0_8], %18 {strides = array<i32>} : memref<3x256xf32, #tpu.memory_space<vmem>>, vector<1x256xf32>,
    return
  }
  func.func @transform_0(%arg0: i32) -> (i32, i32) {
    %c0_i32 = arith.constant 0 : i32
    %c0_i32_0 = arith.constant 0 : i32
    return %c0_i32, %arg0 : i32, i32
  }
  func.func @transform_1(%arg0: i32) -> (i32, i32) {
    %c0_i32 = arith.constant 0 : i32
    %c0_i32_0 = arith.constant 0 : i32
    %c0_i32_1 = arith.constant 0 : i32
    return %c0_i32, %c0_i32_0 : i32, i32
  }
  func.func @transform_2(%arg0: i32) -> (i32, i32) {
    %c0_i32 = arith.constant 0 : i32
    %c0_i32_0 = arith.constant 0 : i32
    return %c0_i32, %arg0 : i32, i32
  }
}

</mosaic_0001>

<llo_original>
// kernel: tpu_custom_call.1
$region0: #{tpu_custom_call.1}
  #allocation0 [shape = 'u32[]', space=smem, size = 0x4, offset = 0x4, fixed_abs, tag = 'smem constant byte address 0x4 - core index']
  #allocation1 [shape = 'u32[72,128]{1,0:T(1,128)}', space=vmem, size = 0x9000, scoped, tag = 'internal scratch']
  %s0 = inlined_call_operand.hbm [shape: f32[8,512], index: 0, kind: input, shape index: {}]
  %s1 = inlined_call_operand.vmem [shape: f32[8,3], index: 1, kind: input, shape index: {}]
  %s2 = inlined_call_operand.hbm [shape: f32[3,512], index: 2, kind: output, shape index: {}]
  %s3 = sld [smem:[#allocation0]]
  $region45: #{tpu_custom_call.1} parent=0
    _
  %s5 = ssub.s32 1, %s3
  %s6 = scalar_select 0, %s5, %s3
  $region1: #{tpu_custom_call.1} parent=0
    #allocation2 [shape = 'u8[16384]{0}', space=vmem, size = 0x4000, scoped, tag = 'input window, operand 0']
    #allocation3 [shape = 's32[2]{0}', space=sflag, size = 0x8, scoped, tag = 'scoped memory for tpu_custom_call.1']
    #allocation4 [shape = 's32[2]{0}', space=sflag, size = 0x8, scoped, tag = 'scoped memory for tpu_custom_call.1']
    #allocation5 [shape = 'u8[8192]{0}', space=vmem, size = 0x2000, scoped, tag = 'output window, operand 0']
    %7 = vsyncpa [#allocation3], 0
    %s8 = scalar_lea.sflag [#allocation3], 1
    %9 = vsyncpa %s8, 0
    %10 = vsyncpa [#allocation4], 0
    %s11 = scalar_lea.sflag [#allocation4], 1
    %12 = vsyncpa %s11, 0
    loop: start=0, step=1, limit=4
    $region2: #{tpu_custom_call.1} parent=1 // loop_pre_header
      _
    $region3: #{tpu_custom_call.1} parent=1 // loop_header
      %s14 = sphi 0, %s18
      %p15 = scmp.ge.s32.totalorder %s14, 4
      %s24 = sphi 0, %s26
      %s27 = sphi 0, %s24
      %s28 = sphi 0, %s27
      %s44 = sphi 0, %s28
      %s48 = sphi 0, %s48
      %s50 = sphi 0, %s48
      %s51 = sphi 0, %s50
      %s65 = sphi 0, %s51
      %s71 = sphi 0, %s73
      %s74 = sphi 0, %s71
      %s75 = sphi 0, %s74
      %s91 = sphi 0, %s75
    $region4: #{tpu_custom_call.1} parent=1 // loop_header_branch
      %17 = sbr.rel (%p15) target = $region8
    $region5: #{tpu_custom_call.1} parent=1 // loop_body
      %s19 = ssub.s32 %s14, 1
      %s20 = ssub.s32 %s14, 2
      %s21 = sadd.s32 %s14, 1
      %s22 = ssub.s32 %s14, %s21
      %p23 = scmp.eq.s32.totalorder %s22, 0
      %s25 = sadd.s32 %s24, 1
      %s26 = scalar_select %p23, %s24, %s25
      %p29 = pneg %p23
      %p30 = scmp.eq.s32.totalorder %s14, 1
      %p31 = por %p29, %p30
      %p32 = scmp.ne.s32.totalorder %s24, %s27
      %p33 = scmp.eq.s32.totalorder %s14, 0
      %p34 = por %p32, %p33
      %p35 = scmp.ne.s32.totalorder %s24, %s27
      %p36 = scmp.eq.s32.totalorder %s19, 1
      %p37 = por %p35, %p36
      %p38 = scmp.ne.s32.totalorder %s27, %s28
      %p39 = scmp.eq.s32.totalorder %s19, 0
      %p40 = por %p38, %p39
      %p41 = scmp.ne.s32.totalorder %s27, %s28
      %p42 = scmp.eq.s32.totalorder %s20, 1
      %p43 = por %p41, %p42
      %p45 = scmp.ne.s32.totalorder %s28, %s44
      %p46 = scmp.eq.s32.totalorder %s20, 0
      %p47 = por %p45, %p46
      %s49 = sadd.s32 %s48, 1
      %p52 = scmp.eq.s32.totalorder %s14, 1
      %p53 = scmp.ne.s32.totalorder %s48, %s50
      %p54 = scmp.eq.s32.totalorder %s14, 0
      %p55 = por %p53, %p54
      %p56 = scmp.ne.s32.totalorder %s48, %s50
      %p57 = scmp.eq.s32.totalorder %s19, 1
      %p58 = por %p56, %p57
      %p59 = scmp.ne.s32.totalorder %s50, %s51
      %p60 = scmp.eq.s32.totalorder %s19, 0
      %p61 = por %p59, %p60
      %p62 = scmp.ne.s32.totalorder %s50, %s51
      %p63 = scmp.eq.s32.totalorder %s20, 1
      %p64 = por %p62, %p63
      %p66 = scmp.ne.s32.totalorder %s51, %s65
      %p67 = scmp.eq.s32.totalorder %s20, 0
      %p68 = por %p66, %p67
      %s69 = ssub.s32 %s14, %s21
      %p70 = scmp.eq.s32.totalorder %s69, 0
      %s72 = sadd.s32 %s71, 1
      %s73 = scalar_select %p70, %s71, %s72
      %p76 = pneg %p70
      %p77 = scmp.eq.s32.totalorder %s14, 1
      %p78 = por %p76, %p77
      %p79 = scmp.ne.s32.totalorder %s71, %s74
      %p80 = scmp.eq.s32.totalorder %s14, 0
      %p81 = por %p79, %p80
      %p82 = scmp.ne.s32.totalorder %s71, %s74
      %p83 = scmp.eq.s32.totalorder %s19, 1
      %p84 = por %p82, %p83
      %p85 = scmp.ne.s32.totalorder %s74, %s75
      %p86 = scmp.eq.s32.totalorder %s19, 0
      %p87 = por %p85, %p86
      %p88 = scmp.ne.s32.totalorder %s74, %s75
      %p89 = scmp.eq.s32.totalorder %s20, 1
      %p90 = por %p88, %p89
      %p92 = scmp.ne.s32.totalorder %s75, %s91
      %p93 = scmp.eq.s32.totalorder %s20, 0
      %p94 = por %p92, %p93
      %p95 = scmp.le.s32.totalorder 1, %s14
      %p96 = scmp.lt.s32.totalorder %s14, 3
      %p97 = pnand %p95, %p96
      %p98 = pneg %p97
      // Predicated region
      $region9: #{tpu_custom_call.1} parent=5 // pred_check
        _
      $region10: #{tpu_custom_call.1} parent=5 // pred_check_branch
        %100 = sbr.rel (%p97) target = $region12
      $region11: #{tpu_custom_call.1} parent=5 // pred_region
        %s101 = ssub.s32 %s14, 1
        // Predicated region
        $region13: #{tpu_custom_call.1} parent=11 // pred_check
          %p102 = pneg %p61
        $region14: #{tpu_custom_call.1} parent=11 // pred_check_branch
          %104 = sbr.rel (%p102) target = $region16
        $region15: #{tpu_custom_call.1} parent=11 // pred_region
          _
        $region16: #{tpu_custom_call.1} parent=11 // pred_fallthru
          _
      $region12: #{tpu_custom_call.1} parent=5 // pred_fallthru
        _
      %p105 = scmp.lt.s32.totalorder %s14, 2
      // Predicated region
      $region17: #{tpu_custom_call.1} parent=5 // pred_check
        %p106 = pneg %p105
      $region18: #{tpu_custom_call.1} parent=5 // pred_check_branch
        %108 = sbr.rel (%p106) target = $region20
      $region19: #{tpu_custom_call.1} parent=5 // pred_region
        // Predicated region
        $region21: #{tpu_custom_call.1} parent=19 // pred_check
          %p109 = pneg %p34
        $region22: #{tpu_custom_call.1} parent=19 // pred_check_branch
          %111 = sbr.rel (%p109) target = $region24
        $region23: #{tpu_custom_call.1} parent=19 // pred_region
          %s112 = sand.u32 %s24, 1
          %s113 = scalar_lea.sflag [#allocation3], %s112
          %s114 = sand.u32 %s24, 1
          %s115 = smul.addr %s114, 16
          %s116 = scalar_lea.vmem [#allocation2], %s115
          %s117 = smul.u32 2, %s14
          %119 = vsyncadd %s113, 0
          %s120 = smul.addr %s117, 8
          %s121 = scalar_lea.hbm %s0, %s120
          %s123 = sshll.u32 %s121, 4
          %s124 = int_to_ptr.hbm [resolvable:$true] %s123
          %s125 = sshll.u32 %s116, 4
          %s126 = int_to_ptr.vmem [resolvable:$true] %s125
          %128 = dma.hbm_to_vmem [thread:$0]  %s124, 256, %s126, %s113
        $region24: #{tpu_custom_call.1} parent=19 // pred_fallthru
          _
      $region20: #{tpu_custom_call.1} parent=5 // pred_fallthru
        _
      %p129 = scmp.le.s32.totalorder 1, %s14
      %p130 = scmp.lt.s32.totalorder %s14, 3
      %p131 = pnand %p129, %p130
      %p132 = pneg %p131
      // Predicated region
      $region25: #{tpu_custom_call.1} parent=5 // pred_check
        _
      $region26: #{tpu_custom_call.1} parent=5 // pred_check_branch
        %134 = sbr.rel (%p131) target = $region28
      $region27: #{tpu_custom_call.1} parent=5 // pred_region
        %s135 = ssub.s32 %s14, 1
        %s136 = sand.u32 %s27, 1
        %s137 = scalar_lea.sflag [#allocation3], %s136
        %s138 = sand.u32 %s27, 1
        %s139 = smul.addr %s138, 16
        %s140 = scalar_lea.vmem [#allocation2], %s139
        // Predicated region
        $region29: #{tpu_custom_call.1} parent=27 // pred_check
          %p141 = pneg %p40
        $region30: #{tpu_custom_call.1} parent=27 // pred_check_branch
          %143 = sbr.rel (%p141) target = $region32
        $region31: #{tpu_custom_call.1} parent=27 // pred_region
          %145 = dma.done %s137, 256
        $region32: #{tpu_custom_call.1} parent=27 // pred_fallthru
          _
        %s146 = sand.u32 %s27, 1
        %s147 = scalar_lea.sflag [#allocation3], %s146
        %s148 = sand.u32 %s27, 1
        %s149 = smul.addr %s148, 16
        %s150 = scalar_lea.vmem [#allocation2], %s149
        %p151 = pneg %p40
        %p152 = pneg %p37
        %p153 = pneg %p61
        %p154 = pneg %p58
        %p155 = pneg %p87
        %p156 = pneg %p84
        %s157 = sand.u32 %s74, 1
        %s158 = scalar_lea.sflag [#allocation4], %s157
        %s159 = sand.u32 %s74, 1
        %s160 = smul.addr %s159, 8
        %s161 = scalar_lea.vmem [#allocation5], %s160
        %s162 = smul.u32 2, %s19
        %s163 = smul.u32 2, %s19
        %v164 = vld [vmem:[%s140] sm:$0xff]
        %v165 = vld [vmem:[%s140 + $0x8] sm:$0xff]
        %v166 = vld [vmem:[%s1] sm:$0xff]
        %168 = vset.pattern.permute.xlu0 0
        %169 = vperm.xlu0 %168, %v166
        %v170 = vpop.permute.xlu0 %169
        %v172 = vmul.f32 %v164, %v170
        %v173 = vmul.f32 %v165, %v170
        %v174 = vrot.slane %v172, 4
        %v175 = vadd.f32 %v172, %v174
        %v176 = vrot.slane %v175, 2
        %v177 = vadd.f32 %v175, %v176
        %v178 = vrot.slane %v177, 1
        %v179 = vadd.f32 %v177, %v178
        %v180 = vrot.slane %v173, 4
        %v181 = vadd.f32 %v173, %v180
        %v182 = vrot.slane %v181, 2
        %v183 = vadd.f32 %v181, %v182
        %v184 = vrot.slane %v183, 1
        %v185 = vadd.f32 %v183, %v184
        %v188 = vrot.slane %v185, 7
        %vm189 = vcmask 1040384
        %v190 = vsel %vm189, %v179, %v188
        %v192 = vlaneseq
        %vm193 = vcmp.ge.s32.totalorder %v192, 0
        %vm194 = vcmp.lt.s32.totalorder %v192, 256
        %vm195 = vmand %vm193, %vm194
        %196 = vst.msk [vmem:[%s161] ss:$4 sm:$0x3] %vm195, %v190
        %197 = vset.pattern.permute.xlu0 1
        %198 = vperm.xlu0 %197, %v166
        %v199 = vpop.permute.xlu0 %198
        %v201 = vmul.f32 %v164, %v199
        %v202 = vmul.f32 %v165, %v199
        %v203 = vrot.slane %v201, 4
        %v204 = vadd.f32 %v201, %v203
        %v205 = vrot.slane %v204, 2
        %v206 = vadd.f32 %v204, %v205
        %v207 = vrot.slane %v206, 1
        %v208 = vadd.f32 %v206, %v207
        %v209 = vrot.slane %v202, 4
        %v210 = vadd.f32 %v202, %v209
        %v211 = vrot.slane %v210, 2
        %v212 = vadd.f32 %v210, %v211
        %v213 = vrot.slane %v212, 1
        %v214 = vadd.f32 %v212, %v213
        %v217 = vrot.slane %v214, 7
        %v218 = vsel %vm189, %v208, %v217
        %s220 = scalar_lea.vmem %s161, 1 [#allocation5]
        %221 = vst.msk [vmem:[%s220] ss:$4 sm:$0x3] %vm195, %v218
        %222 = vset.pattern.permute.xlu0 2
        %223 = vperm.xlu0 %222, %v166
        %v224 = vpop.permute.xlu0 %223
        %v226 = vmul.f32 %v164, %v224
        %v227 = vmul.f32 %v165, %v224
        %v228 = vrot.slane %v226, 4
        %v229 = vadd.f32 %v226, %v228
        %v230 = vrot.slane %v229, 2
        %v231 = vadd.f32 %v229, %v230
        %v232 = vrot.slane %v231, 1
        %v233 = vadd.f32 %v231, %v232
        %v234 = vrot.slane %v227, 4
        %v235 = vadd.f32 %v227, %v234
        %v236 = vrot.slane %v235, 2
        %v237 = vadd.f32 %v235, %v236
        %v238 = vrot.slane %v237, 1
        %v239 = vadd.f32 %v237, %v238
        %v242 = vrot.slane %v239, 7
        %v243 = vsel %vm189, %v233, %v242
        %s245 = scalar_lea.vmem %s161, 2 [#allocation5]
        %246 = vst.msk [vmem:[%s245] ss:$4 sm:$0x3] %vm195, %v243
        %s247 = sand.u32 %s74, 1
        %s248 = scalar_lea.sflag [#allocation4], %s247
        %s249 = sand.u32 %s74, 1
        %s250 = smul.addr %s249, 8
        %s251 = scalar_lea.vmem [#allocation5], %s250
        // Predicated region
        $region33: #{tpu_custom_call.1} parent=27 // pred_check
          %p252 = pneg %p84
        $region34: #{tpu_custom_call.1} parent=27 // pred_check_branch
          %254 = sbr.rel (%p252) target = $region36
        $region35: #{tpu_custom_call.1} parent=27 // pred_region
          %s255 = smul.u32 2, %s19
          %257 = vsyncadd %s248, 0
          %s258 = smul.addr %s255, 4
          %s259 = scalar_lea.hbm %s2, %s258
          %s261 = sshll.u32 %s251, 4
          %s262 = int_to_ptr.vmem [resolvable:$true] %s261
          %s263 = sshll.u32 %s259, 4
          %s264 = int_to_ptr.hbm [resolvable:$true] %s263
          %266 = dma.vmem_to_hbm [thread:$0]  %s262, 128, %s264, %s248
        $region36: #{tpu_custom_call.1} parent=27 // pred_fallthru
          _
      $region28: #{tpu_custom_call.1} parent=5 // pred_fallthru
        _
      %p267 = scmp.le.s32.totalorder 2, %s14
      // Predicated region
      $region37: #{tpu_custom_call.1} parent=5 // pred_check
        %p268 = pneg %p267
      $region38: #{tpu_custom_call.1} parent=5 // pred_check_branch
        %270 = sbr.rel (%p268) target = $region40
      $region39: #{tpu_custom_call.1} parent=5 // pred_region
        %s271 = ssub.s32 %s14, 2
        // Predicated region
        $region41: #{tpu_custom_call.1} parent=39 // pred_check
          %p272 = pneg %p90
        $region42: #{tpu_custom_call.1} parent=39 // pred_check_branch
          %274 = sbr.rel (%p272) target = $region44
        $region43: #{tpu_custom_call.1} parent=39 // pred_region
          %s275 = sand.u32 %s75, 1
          %s276 = scalar_lea.sflag [#allocation4], %s275
          %s277 = sand.u32 %s75, 1
          %s278 = smul.addr %s277, 8
          %s279 = scalar_lea.vmem [#allocation5], %s278
          %281 = dma.done %s276, 128
        $region44: #{tpu_custom_call.1} parent=39 // pred_fallthru
          _
      $region40: #{tpu_custom_call.1} parent=5 // pred_fallthru
        _
    $region6: #{tpu_custom_call.1} parent=1 // loop_footer
      %s18 = sadd.s32 1, %s14
    $region7: #{tpu_custom_call.1} parent=1 // loop_footer_branch
      %13 = sbr.rel target = $region3
    $region8: #{tpu_custom_call.1} parent=1 // loop_exit
      _
    %282 = vsyncpa [#allocation3], 1
    %s283 = scalar_lea.sflag [#allocation3], 1
    %284 = vsyncpa %s283, 1
    %285 = vsyncpa [#allocation4], 1
    %s286 = scalar_lea.sflag [#allocation4], 1
    %287 = vsyncpa %s286, 1

</llo_original>
